<compile_context>
chip_gen: v6e
topology: v6e:2x2x1
jax: 0.10.0
libtpu: 0.0.40
codegen_flags: <defaults>
</compile_context>

<pallas_src>
import functools

import jax
import jax.numpy as jnp
from jax import lax
from jax.experimental import pallas as pl
from jax.experimental.pallas import tpu as pltpu

# Contract the minor (last) dim of both operands:  act[b, k] * W[o, k] -> [b, o]
_NT = (((1,), (1,)), ((), ()))


def _mlp_kernel(x_ref, w1_ref, b1_ref, w2_ref, b2_ref, w3_ref, b3_ref, y_ref):
    # fc1 + relu  (cast x tile to the matmul dtype in-kernel; f32 MXU accumulation)
    x = x_ref[...].astype(w1_ref.dtype)                       # [blk_b, in_dim]
    h = lax.dot_general(x, w1_ref[...], _NT,
                        preferred_element_type=jnp.float32)   # [blk_b, n_hid]
    h = jnp.maximum(h + b1_ref[...], 0.0).astype(w2_ref.dtype)
    # fc2 + relu
    h = lax.dot_general(h, w2_ref[...], _NT,
                        preferred_element_type=jnp.float32)   # [blk_b, n_hid]
    h = jnp.maximum(h + b2_ref[...], 0.0).astype(w3_ref.dtype)
    # fc3 (no activation)
    y = lax.dot_general(h, w3_ref[...], _NT,
                        preferred_element_type=jnp.float32)   # [blk_b, out_dim]
    y_ref[...] = (y + b3_ref[...]).astype(y_ref.dtype)


def _round_up(x, m):
    return ((x + m - 1) // m) * m


def _pick_block_b(B):
    """Batch tile (sublane dim).

    Small B: one full tile (block == array dim, so no (8,128) issue).
    Large B: ~ceil(B/2) rounded to 128, capped at 8192 -> >=2 roughly even
    "parallel" grid steps (v7x dual-TC sharding) while double-buffered x/y
    tiles plus f32 intermediates stay a few MiB, far under the 32 MiB scoped
    VMEM limit on all generations (incl. v7x's 64 MiB physical).
    """
    if B <= 512:
        return B
    return min(8192, _round_up((B + 1) // 2, 128))


@functools.partial(jax.jit, static_argnames=("block_b", "compute_dtype"))
def nn_forward(x, params, *, block_b=None, compute_dtype=jnp.bfloat16):
    """x: [B, in_dim] -> y: [B, out_dim].  params: torch-layout W[out,in], b[out]."""
    B, in_dim = x.shape
    n_hid = params["w1"].shape[0]
    out_dim = params["w3"].shape[0]

    if block_b is None:
        block_b = _pick_block_b(B)

    # Matmul operands in compute dtype (weights are a few KB, cast is negligible);
    # biases stay f32 and are added to the f32 accumulators.
    w1 = params["w1"].astype(compute_dtype)                 # [n_hid, in_dim]
    w2 = params["w2"].astype(compute_dtype)                 # [n_hid, n_hid]
    w3 = params["w3"].astype(compute_dtype)                 # [out_dim, n_hid]
    b1 = params["b1"].reshape(1, n_hid).astype(jnp.float32)
    b2 = params["b2"].reshape(1, n_hid).astype(jnp.float32)
    b3 = params["b3"].reshape(1, out_dim).astype(jnp.float32)

    grid = (pl.cdiv(B, block_b),)
    resident = lambda shape: pl.BlockSpec(shape, lambda i: (0, 0))

    y = pl.pallas_call(
        _mlp_kernel,
        out_shape=jax.ShapeDtypeStruct((B, out_dim), x.dtype),
        grid_spec=pl.GridSpec(
            grid=grid,
            in_specs=[
                pl.BlockSpec((block_b, in_dim), lambda i: (i, 0)),  # x tile (f32, untransposed)
                resident((n_hid, in_dim)),    # W1
                resident((1, n_hid)),         # b1
                resident((n_hid, n_hid)),     # W2
                resident((1, n_hid)),         # b2
                resident((out_dim, n_hid)),   # W3
                resident((1, out_dim)),       # b3
            ],
            out_specs=pl.BlockSpec((block_b, out_dim), lambda i: (i, 0)),
        ),
        compiler_params=pltpu.CompilerParams(
            dimension_semantics=("parallel",),
            vmem_limit_bytes=32 << 20,
        ),
    )(x, w1, b1, w2, b2, w3, b3)

    return y


def init_params(key, in_dim, n_hid, out_dim):
    """torch.nn.Linear default init: U(-1/sqrt(fan_in), +1/sqrt(fan_in)).
    Weights in torch layout [out, in]; biases 1-D [out]."""
    ks = jax.random.split(key, 6)

    def lin(kw, kb, fan_in, fan_out):
        bound = 1.0 / jnp.sqrt(fan_in)
        w = jax.random.uniform(kw, (fan_out, fan_in), jnp.float32, -bound, bound)
        b = jax.random.uniform(kb, (fan_out,), jnp.float32, -bound, bound)
        return w, b

    w1, b1 = lin(ks[0], ks[1], in_dim, n_hid)
    w2, b2 = lin(ks[2], ks[3], n_hid, n_hid)
    w3, b3 = lin(ks[4], ks[5], n_hid, out_dim)
    return {"w1": w1, "b1": b1, "w2": w2, "b2": b2, "w3": w3, "b3": b3}


def nn_forward_ref(x, p, dtype=jnp.float32):
    """Pure-JAX reference (same operand-dtype / f32-accum recipe when dtype=bf16)."""
    h = jnp.dot(x.astype(dtype), p["w1"].T.astype(dtype),
                preferred_element_type=jnp.float32)
    h = jnp.maximum(h + p["b1"].reshape(1, -1), 0.0).astype(dtype)
    h = jnp.dot(h, p["w2"].T.astype(dtype), preferred_element_type=jnp.float32)
    h = jnp.maximum(h + p["b2"].reshape(1, -1), 0.0).astype(dtype)
    y = jnp.dot(h, p["w3"].T.astype(dtype), preferred_element_type=jnp.float32)
    return y + p["b3"].reshape(1, -1)


if __name__ == "__main__":
    key = jax.random.PRNGKey(0)
    kx, kp, kx2 = jax.random.split(key, 3)

    in_dim, n_hid, out_dim = 32, 32, 16
    params = init_params(kp, in_dim, n_hid, out_dim)

    # Tiny case (matches the module's intended per-state usage): single tile.
    B = 8
    x = jax.random.normal(kx, (B, in_dim), jnp.float32)
    y = jax.block_until_ready(nn_forward(x, params))
    assert y.shape == (B, out_dim)
    assert jnp.allclose(y, nn_forward_ref(x, params, jnp.bfloat16),
                        atol=1e-3, rtol=1e-3)   # same precision recipe
    assert jnp.allclose(y, nn_forward_ref(x, params, jnp.float32),
                        atol=5e-2, rtol=5e-2)   # full-precision semantics

    # Larger ragged batch: 2 "parallel" grid steps (v7x dual-TC path), last
    # tile partial -> exercises Pallas output masking on the batch sublanes.
    B2 = 1500
    x2 = jax.random.normal(kx2, (B2, in_dim), jnp.float32)
    y2 = jax.block_until_ready(nn_forward(x2, params))
    assert y2.shape == (B2, out_dim)
    assert jnp.allclose(y2, nn_forward_ref(x2, params, jnp.bfloat16),
                        atol=1e-3, rtol=1e-3)

    print("KERNEL_OK")
</pallas_src>

<mosaic_0001>
module attributes {stable_mosaic.version = 11 : i64} {
  func.func @_mlp_kernel(%arg0: i32, %arg1: memref<8x32xf32, #tpu.memory_space<vmem>>, %arg2: memref<32x32xbf16, #tpu.memory_space<vmem>>, %arg3: memref<1x32xf32, #tpu.memory_space<vmem>>, %arg4: memref<32x32xbf16, #tpu.memory_space<vmem>>, %arg5: memref<1x32xf32, #tpu.memory_space<vmem>>, %arg6: memref<16x32xbf16, #tpu.memory_space<vmem>>, %arg7: memref<1x16xf32, #tpu.memory_space<vmem>>, %arg8: memref<8x16xf32, #tpu.memory_space<vmem>>) attributes {dimension_semantics = [#tpu.dimension_semantics<parallel>], iteration_bounds = array<i64: 1>, scalar_prefetch = 0 : i64, scratch_operands = 0 : i64, tpu.core_type = #tpu.core_type<tc>, window_params = [{transform_indices = @transform_0, window_bounds = array<i64: 8, 32>}, {pipeline_mode = #tpu.pipeline_mode<synchronous>, transform_indices = @transform_1, window_bounds = array<i64: 32, 32>}, {pipeline_mode = #tpu.pipeline_mode<synchronous>, transform_indices = @transform_2, window_bounds = array<i64: 1, 32>}, {pipeline_mode = #tpu.pipeline_mode<synchronous>, transform_indices = @transform_3, window_bounds = array<i64: 32, 32>}, {pipeline_mode = #tpu.pipeline_mode<synchronous>, transform_indices = @transform_4, window_bounds = array<i64: 1, 32>}, {pipeline_mode = #tpu.pipeline_mode<synchronous>, transform_indices = @transform_5, window_bounds = array<i64: 16, 32>}, {pipeline_mode = #tpu.pipeline_mode<synchronous>, transform_indices = @transform_6, window_bounds = array<i64: 1, 16>}, {transform_indices = @transform_7, window_bounds = array<i64: 8, 16>}]} {
    %c0 = arith.constant 0 : index
    %c0_0 = arith.constant 0 : index
    %0 = vector.load %arg1[%c0, %c0_0] : memref<8x32xf32, #tpu.memory_space<vmem>>, vector<8x32xf32>
    %1 = arith.truncf %0 : vector<8x32xf32> to vector<8x32xbf16>
    %c0_1 = arith.constant 0 : index
    %c0_2 = arith.constant 0 : index
    %2 = vector.load %arg2[%c0_1, %c0_2] : memref<32x32xbf16, #tpu.memory_space<vmem>>, vector<32x32xbf16>
    %cst = arith.constant dense<0.000000e+00> : vector<8x32xf32>
    %3 = tpu.matmul %1, %2, %cst {dimension_numbers = #tpu.dot_dimension_numbers<[1], [1], [0], [0], [0, 0, 1, 0], [], []>} : vector<8x32xbf16>, vector<32x32xbf16>, vector<8x32xf32> -> vector<8x32xf32>
    %c0_3 = arith.constant 0 : index
    %c0_4 = arith.constant 0 : index
    %4 = vector.load %arg3[%c0_3, %c0_4] : memref<1x32xf32, #tpu.memory_space<vmem>>, vector<1x32xf32>
    %5 = vector.broadcast %4 : vector<1x32xf32> to vector<8x32xf32>
    %6 = arith.addf %3, %5 : vector<8x32xf32>
    %cst_5 = arith.constant 0.000000e+00 : f32
    %7 = vector.broadcast %cst_5 : f32 to vector<8x32xf32>
    %8 = arith.maximumf %6, %7 : vector<8x32xf32>
    %9 = arith.truncf %8 : vector<8x32xf32> to vector<8x32xbf16>
    %c0_6 = arith.constant 0 : index
    %c0_7 = arith.constant 0 : index
    %10 = vector.load %arg4[%c0_6, %c0_7] : memref<32x32xbf16, #tpu.memory_space<vmem>>, vector<32x32xbf16>
    %cst_8 = arith.constant dense<0.000000e+00> : vector<8x32xf32>
    %11 = tpu.matmul %9, %10, %cst_8 {dimension_numbers = #tpu.dot_dimension_numbers<[1], [1], [0], [0], [0, 0, 1, 0], [], []>} : vector<8x32xbf16>, vector<32x32xbf16>, vector<8x32xf32> -> vector<8x32xf32>
    %c0_9 = arith.constant 0 : index
    %c0_10 = arith.constant 0 : index
    %12 = vector.load %arg5[%c0_9, %c0_10] : memref<1x32xf32, #tpu.memory_space<vmem>>, vector<1x32xf32>
    %13 = vector.broadcast %12 : vector<1x32xf32> to vector<8x32xf32>
    %14 = arith.addf %11, %13 : vector<8x32xf32>
    %cst_11 = arith.constant 0.000000e+00 : f32
    %15 = vector.broadcast %cst_11 : f32 to vector<8x32xf32>
    %16 = arith.maximumf %14, %15 : vector<8x32xf32>
    %17 = arith.truncf %16 : vector<8x32xf32> to vector<8x32xbf16>
    %c0_12 = arith.constant 0 : index
    %c0_13 = arith.constant 0 : index
    %18 = vector.load %arg6[%c0_12, %c0_13] : memref<16x32xbf16, #tpu.memory_space<vmem>>, vector<16x32xbf16>
    %cst_14 = arith.constant dense<0.000000e+00> : vector<8x16xf32>
    %19 = tpu.matmul %17, %18, %cst_14 {dimension_numbers = #tpu.dot_dimension_numbers<[1], [1], [0], [0], [0, 0, 1, 0], [], []>} : vector<8x32xbf16>, vector<16x32xbf16>, vector<8x16xf32> -> vector<8x16xf32>
    %c0_15 = arith.constant 0 : index
    %c0_16 = arith.constant 0 : index
    %20 = vector.load %arg7[%c0_15, %c0_16] : memref<1x16xf32, #tpu.memory_space<vmem>>, vector<1x16xf32>
    %21 = vector.broadcast %20 : vector<1x16xf32> to vector<8x16xf32>
    %22 = arith.addf %19, %21 : vector<8x16xf32>
    %c0_17 = arith.constant 0 : index
    %c0_18 = arith.constant 0 : index
    %23 = vector.load %arg8[%c0_17, %c0_18] : memref<8x16xf32, #tpu.memory_space<vmem>>, vector<8x16xf32>
    tpu.vector_store %arg8[%c0_17, %c0_18], %22 {strides = array<i32>} : memref<8x16xf32, #tpu.memory_space<vmem>>, vector<8x16xf32>,
    return
  }
  func.func @transform_0(%arg0: i32) -> (i32, i32) {
    %c0_i32 = arith.constant 0 : i32
    %c0_i32_0 = arith.constant 0 : i32
    return %arg0, %c0_i32 : i32, i32
  }
  func.func @transform_1(%arg0: i32) -> (i32, i32) {
    %c0_i32 = arith.constant 0 : i32
    %c0_i32_0 = arith.constant 0 : i32
    %c0_i32_1 = arith.constant 0 : i32
    return %c0_i32, %c0_i32_0 : i32, i32
  }
  func.func @transform_2(%arg0: i32) -> (i32, i32) {
    %c0_i32 = arith.constant 0 : i32
    %c0_i32_0 = arith.constant 0 : i32
    %c0_i32_1 = arith.constant 0 : i32
    return %c0_i32, %c0_i32_0 : i32, i32
  }
  func.func @transform_3(%arg0: i32) -> (i32, i32) {
    %c0_i32 = arith.constant 0 : i32
    %c0_i32_0 = arith.constant 0 : i32
    %c0_i32_1 = arith.constant 0 : i32
    return %c0_i32, %c0_i32_0 : i32, i32
  }
  func.func @transform_4(%arg0: i32) -> (i32, i32) {
    %c0_i32 = arith.constant 0 : i32
    %c0_i32_0 = arith.constant 0 : i32
    %c0_i32_1 = arith.constant 0 : i32
    return %c0_i32, %c0_i32_0 : i32, i32
  }
  func.func @transform_5(%arg0: i32) -> (i32, i32) {
    %c0_i32 = arith.constant 0 : i32
    %c0_i32_0 = arith.constant 0 : i32
    %c0_i32_1 = arith.constant 0 : i32
    return %c0_i32, %c0_i32_0 : i32, i32
  }
  func.func @transform_6(%arg0: i32) -> (i32, i32) {
    %c0_i32 = arith.constant 0 : i32
    %c0_i32_0 = arith.constant 0 : i32
    %c0_i32_1 = arith.constant 0 : i32
    return %c0_i32, %c0_i32_0 : i32, i32
  }
  func.func @transform_7(%arg0: i32) -> (i32, i32) {
    %c0_i32 = arith.constant 0 : i32
    %c0_i32_0 = arith.constant 0 : i32
    return %arg0, %c0_i32 : i32, i32
  }
}

</mosaic_0001>

<llo_original>
// kernel: nn_forward.1
$region0: #{nn_forward.1}
  #allocation0 [shape = 'u32[]', space=smem, size = 0x4, offset = 0x4, fixed_abs, tag = 'smem constant byte address 0x4 - core index']
  #allocation1 [shape = 'u32[144,128]{1,0:T(1,128)}', space=vmem, size = 0x12000, scoped, tag = 'internal scratch']
  %s0 = inlined_call_operand.vmem [shape: f32[8,32], index: 0, kind: input, shape index: {}]
  %s1 = inlined_call_operand.vmem [shape: bf16[32,32], index: 1, kind: input, shape index: {}]
  %s2 = inlined_call_operand.vmem [shape: f32[1,32], index: 2, kind: input, shape index: {}]
  %s3 = inlined_call_operand.vmem [shape: bf16[32,32], index: 3, kind: input, shape index: {}]
  %s4 = inlined_call_operand.vmem [shape: f32[1,32], index: 4, kind: input, shape index: {}]
  %s5 = inlined_call_operand.vmem [shape: bf16[16,32], index: 5, kind: input, shape index: {}]
  %s6 = inlined_call_operand.vmem [shape: f32[1,16], index: 6, kind: input, shape index: {}]
  %s7 = inlined_call_operand.hbm [shape: f32[8,16], index: 7, kind: output, shape index: {}]
  %s8 = sld [smem:[#allocation0]]
  $region38: #{nn_forward.1} parent=0
    _
  %s10 = ssub.s32 1, %s8
  %s11 = scalar_select 0, %s10, %s8
  $region1: #{nn_forward.1} parent=0
    #allocation2 [shape = 'u8[4096]{0}', space=vmem, size = 0x1000, scoped, tag = 'output window, operand 0, single buffered']
    #allocation3 [shape = 's32[1]{0}', space=sflag, size = 0x4, scoped, tag = 'scoped memory for nn_forward.1']
    %12 = vsyncpa [#allocation3], 0
    // Predicated region
    $region2: #{nn_forward.1} parent=1 // pred_check
      _
    $region3: #{nn_forward.1} parent=1 // pred_check_branch
      %14 = sbr.rel (0) target = $region5
    $region4: #{nn_forward.1} parent=1 // pred_region
      _
    $region5: #{nn_forward.1} parent=1 // pred_fallthru
      _
    // Predicated region
    $region6: #{nn_forward.1} parent=1 // pred_check
      _
    $region7: #{nn_forward.1} parent=1 // pred_check_branch
      %16 = sbr.rel (0) target = $region9
    $region8: #{nn_forward.1} parent=1 // pred_region
      _
    $region9: #{nn_forward.1} parent=1 // pred_fallthru
      _
    // Predicated region
    $region10: #{nn_forward.1} parent=1 // pred_check
      _
    $region11: #{nn_forward.1} parent=1 // pred_check_branch
      %18 = sbr.rel (0) target = $region13
    $region12: #{nn_forward.1} parent=1 // pred_region
      _
    $region13: #{nn_forward.1} parent=1 // pred_fallthru
      _
    // Predicated region
    $region14: #{nn_forward.1} parent=1 // pred_check
      _
    $region15: #{nn_forward.1} parent=1 // pred_check_branch
      %20 = sbr.rel (0) target = $region17
    $region16: #{nn_forward.1} parent=1 // pred_region
      _
    $region17: #{nn_forward.1} parent=1 // pred_fallthru
      _
    // Predicated region
    $region18: #{nn_forward.1} parent=1 // pred_check
      _
    $region19: #{nn_forward.1} parent=1 // pred_check_branch
      %22 = sbr.rel (0) target = $region21
    $region20: #{nn_forward.1} parent=1 // pred_region
      _
    $region21: #{nn_forward.1} parent=1 // pred_fallthru
      _
    // Predicated region
    $region22: #{nn_forward.1} parent=1 // pred_check
      _
    $region23: #{nn_forward.1} parent=1 // pred_check_branch
      %24 = sbr.rel (0) target = $region25
    $region24: #{nn_forward.1} parent=1 // pred_region
      _
    $region25: #{nn_forward.1} parent=1 // pred_fallthru
      _
    // Predicated region
    $region26: #{nn_forward.1} parent=1 // pred_check
      _
    $region27: #{nn_forward.1} parent=1 // pred_check_branch
      %26 = sbr.rel (0) target = $region29
    $region28: #{nn_forward.1} parent=1 // pred_region
      _
    $region29: #{nn_forward.1} parent=1 // pred_fallthru
      _
    %v28 = vld [vmem:[%s0] sm:$0xff]
    %v29 = vpack.c.bf16 %v28, %v28
    %v30 = vld [vmem:[%s1] sm:$0xf]
    %v31 = vld [vmem:[%s1 + $0x4] sm:$0xf]
    %v32 = vld [vmem:[%s1 + $0x8] sm:$0xf]
    %v33 = vld [vmem:[%s1 + $0xc] sm:$0xf]
    %v34 = vld [vmem:[%s2] sm:$0x1]
    %v36 = vlaneseq
    %v37 = vshrl.u32 %v36, 7
    %v38 = vsub.s32 0, %v37
    %v39 = vrot.slane %v34, %v38
    %v45 = vunpack.c.l.b16 %v30
    %v46 = vunpack.c.l.b16 %v31
    %v47 = vunpack.c.l.b16 %v32
    %v48 = vunpack.c.l.b16 %v33
    %v49 = vpack.c.b16 %v46, %v45
    %v50 = vpack.c.b16 %v48, %v47
    %vm51 = vcmask 261120
    %v53 = vsel %vm51, %v29, 0
    %v56 = vsel %vm51, %v49, 0
    %v59 = vsel %vm51, %v50, 0
    %61 = vmatprep.subr.bf16.mxu0 0
    %62 = vmatpush1.bf16.xpose.msra.mxu0 0
    %63 = vmatprep.subr.bf16.mxu0 0
    %64 = vmatpush1.bf16.xpose.msra.mxu0 0
    %65 = vmatprep.subr.bf16.mxu0 0
    %66 = vmatpush1.bf16.xpose.msra.mxu0 0
    %67 = vmatprep.subr.bf16.mxu0 0
    %68 = vmatpush1.bf16.xpose.msra.mxu0 0
    %69 = vmatprep.subr.bf16.mxu0 0
    %70 = vmatpush1.bf16.xpose.msra.mxu0 0
    %71 = vmatprep.subr.bf16.mxu0 0
    %72 = vmatpush1.bf16.xpose.msra.mxu0 0
    %73 = vmatprep.subr.bf16.mxu0 0
    %74 = vmatpush1.bf16.xpose.msra.mxu0 %v59
    %75 = vmatprep.subr.bf16.mxu0 0
    %76 = vmatpush1.bf16.xpose.msra.mxu0 %v56
    %77 = vmatprep.subr.bf16.mxu0 0
    %78 = vmatpush2.bf16.xpose.msra.mxu0 0
    %79 = vmatprep.subr.bf16.mxu0 0
    %80 = vmatpush2.bf16.xpose.msra.mxu0 0
    %81 = vmatprep.subr.bf16.mxu0 0
    %82 = vmatpush2.bf16.xpose.msra.mxu0 0
    %83 = vmatprep.subr.bf16.mxu0 0
    %84 = vmatpush2.bf16.xpose.msra.mxu0 0
    %85 = vmatprep.subr.bf16.mxu0 0
    %86 = vmatpush2.bf16.xpose.msra.mxu0 0
    %87 = vmatprep.subr.bf16.mxu0 0
    %88 = vmatpush2.bf16.xpose.msra.mxu0 0
    %89 = vmatprep.subr.bf16.mxu0 0
    %90 = vmatpush2.bf16.xpose.msra.mxu0 0
    %91 = vmatprep.subr.bf16.mxu0 0
    %92 = vmatpush2.bf16.xpose.msra.mxu0 0
    %93 = vmatprep.mubr.bf16.mxu0 0
    %94 = vmatmul.mubr.bf16.gmra.mxu0 %v53
    %v95 = vpop.f32.mrf.mxu0
    %v96 = vadd.f32 %v39, %v95
    %v97 = vpop.f32.mrf.mxu0
    %v98 = vpop.f32.mrf.mxu0
    %v99 = vpop.f32.mrf.mxu0
    %100 = vdwg.mxu0
    %v101 = vmax.f32 %v96, 0.0
    %v102 = vpack.c.bf16 %v101, %v101
    %v103 = vld [vmem:[%s3] sm:$0xf]
    %v104 = vld [vmem:[%s3 + $0x4] sm:$0xf]
    %v105 = vld [vmem:[%s3 + $0x8] sm:$0xf]
    %v106 = vld [vmem:[%s3 + $0xc] sm:$0xf]
    %v107 = vld [vmem:[%s4] sm:$0x1]
    %v109 = vlaneseq
    %v110 = vshrl.u32 %v109, 7
    %v111 = vsub.s32 0, %v110
    %v112 = vrot.slane %v107, %v111
    %v118 = vunpack.c.l.b16 %v103
    %v119 = vunpack.c.l.b16 %v104
    %v120 = vunpack.c.l.b16 %v105
    %v121 = vunpack.c.l.b16 %v106
    %v122 = vpack.c.b16 %v119, %v118
    %v123 = vpack.c.b16 %v121, %v120
    %v125 = vsel %vm51, %v102, 0
    %v128 = vsel %vm51, %v122, 0
    %v131 = vsel %vm51, %v123, 0
    %133 = vmatprep.subr.bf16.mxu0 0
    %134 = vmatpush1.bf16.xpose.msra.mxu0 0
    %135 = vmatprep.subr.bf16.mxu0 0
    %136 = vmatpush1.bf16.xpose.msra.mxu0 0
    %137 = vmatprep.subr.bf16.mxu0 0
    %138 = vmatpush1.bf16.xpose.msra.mxu0 0
    %139 = vmatprep.subr.bf16.mxu0 0
    %140 = vmatpush1.bf16.xpose.msra.mxu0 0
    %141 = vmatprep.subr.bf16.mxu0 0
    %142 = vmatpush1.bf16.xpose.msra.mxu0 0
    %143 = vmatprep.subr.bf16.mxu0 0
    %144 = vmatpush1.bf16.xpose.msra.mxu0 0
    %145 = vmatprep.subr.bf16.mxu0 0
    %146 = vmatpush1.bf16.xpose.msra.mxu0 %v131
    %147 = vmatprep.subr.bf16.mxu0 0
    %148 = vmatpush1.bf16.xpose.msra.mxu0 %v128
    %149 = vmatprep.subr.bf16.mxu0 0
    %150 = vmatpush2.bf16.xpose.msra.mxu0 0
    %151 = vmatprep.subr.bf16.mxu0 0
    %152 = vmatpush2.bf16.xpose.msra.mxu0 0
    %153 = vmatprep.subr.bf16.mxu0 0
    %154 = vmatpush2.bf16.xpose.msra.mxu0 0
    %155 = vmatprep.subr.bf16.mxu0 0
    %156 = vmatpush2.bf16.xpose.msra.mxu0 0
    %157 = vmatprep.subr.bf16.mxu0 0
    %158 = vmatpush2.bf16.xpose.msra.mxu0 0
    %159 = vmatprep.subr.bf16.mxu0 0
    %160 = vmatpush2.bf16.xpose.msra.mxu0 0
    %161 = vmatprep.subr.bf16.mxu0 0
    %162 = vmatpush2.bf16.xpose.msra.mxu0 0
    %163 = vmatprep.subr.bf16.mxu0 0
    %164 = vmatpush2.bf16.xpose.msra.mxu0 0
    %165 = vmatprep.mubr.bf16.mxu0 0
    %166 = vmatmul.mubr.bf16.gmra.mxu0 %v125
    %v167 = vpop.f32.mrf.mxu0
    %v168 = vadd.f32 %v112, %v167
    %v169 = vpop.f32.mrf.mxu0
    %v170 = vpop.f32.mrf.mxu0
    %v171 = vpop.f32.mrf.mxu0
    %172 = vdwg.mxu0
    %v173 = vmax.f32 %v168, 0.0
    %v174 = vpack.c.bf16 %v173, %v173
    %v175 = vld [vmem:[%s5] sm:$0xf]
    %v176 = vld [vmem:[%s5 + $0x4] sm:$0xf]
    %v177 = vld [vmem:[%s6] sm:$0x1]
    %v179 = vlaneseq
    %v180 = vshrl.u32 %v179, 7
    %v181 = vsub.s32 0, %v180
    %v182 = vrot.slane %v177, %v181
    %v186 = vunpack.c.l.b16 %v175
    %v187 = vunpack.c.l.b16 %v176
    %v188 = vpack.c.b16 %v187, %v186
    %v190 = vsel %vm51, %v174, 0
    %v193 = vsel %vm51, %v188, 0
    %195 = vmatprep.subr.bf16.mxu0 0
    %196 = vmatpush1.bf16.xpose.msra.mxu0 0
    %197 = vmatprep.subr.bf16.mxu0 0
    %198 = vmatpush1.bf16.xpose.msra.mxu0 0
    %199 = vmatprep.subr.bf16.mxu0 0
    %200 = vmatpush1.bf16.xpose.msra.mxu0 0
    %201 = vmatprep.subr.bf16.mxu0 0
    %202 = vmatpush1.bf16.xpose.msra.mxu0 0
    %203 = vmatprep.subr.bf16.mxu0 0
    %204 = vmatpush1.bf16.xpose.msra.mxu0 0
    %205 = vmatprep.subr.bf16.mxu0 0
    %206 = vmatpush1.bf16.xpose.msra.mxu0 0
    %207 = vmatprep.subr.bf16.mxu0 0
    %208 = vmatpush1.bf16.xpose.msra.mxu0 0
    %209 = vmatprep.subr.bf16.mxu0 0
    %210 = vmatpush1.bf16.xpose.msra.mxu0 %v193
    %211 = vmatprep.subr.bf16.mxu0 0
    %212 = vmatpush2.bf16.xpose.msra.mxu0 0
    %213 = vmatprep.subr.bf16.mxu0 0
    %214 = vmatpush2.bf16.xpose.msra.mxu0 0
    %215 = vmatprep.subr.bf16.mxu0 0
    %216 = vmatpush2.bf16.xpose.msra.mxu0 0
    %217 = vmatprep.subr.bf16.mxu0 0
    %218 = vmatpush2.bf16.xpose.msra.mxu0 0
    %219 = vmatprep.subr.bf16.mxu0 0
    %220 = vmatpush2.bf16.xpose.msra.mxu0 0
    %221 = vmatprep.subr.bf16.mxu0 0
    %222 = vmatpush2.bf16.xpose.msra.mxu0 0
    %223 = vmatprep.subr.bf16.mxu0 0
    %224 = vmatpush2.bf16.xpose.msra.mxu0 0
    %225 = vmatprep.subr.bf16.mxu0 0
    %226 = vmatpush2.bf16.xpose.msra.mxu0 0
    %227 = vmatprep.mubr.bf16.mxu0 0
    %228 = vmatmul.mubr.bf16.gmra.mxu0 %v190
    %v229 = vpop.f32.mrf.mxu0
    %v230 = vadd.f32 %v182, %v229
    %v231 = vpop.f32.mrf.mxu0
    %v232 = vpop.f32.mrf.mxu0
    %v233 = vpop.f32.mrf.mxu0
    %234 = vdwg.mxu0
    %vm235 = vcmask 130048
    %236 = vst.msk [vmem:[#allocation2] sm:$0xff] %vm235, %v230
    // Predicated region
    $region30: #{nn_forward.1} parent=1 // pred_check
      _
    $region31: #{nn_forward.1} parent=1 // pred_check_branch
      %238 = sbr.rel (0) target = $region33
    $region32: #{nn_forward.1} parent=1 // pred_region
      %s240 = ssub.s32 128, 128
      %241 = vsyncadd [#allocation3], %s240
      %s243 = sshll.u32 [#allocation2], 4
      %s244 = int_to_ptr.vmem [resolvable:$true] %s243
      %246 = dma.vmem_to_hbm [thread:$0]  %s244, 128, %s7, [#allocation3]
    $region33: #{nn_forward.1} parent=1 // pred_fallthru
      _
    // Predicated region
    $region34: #{nn_forward.1} parent=1 // pred_check
      _
    $region35: #{nn_forward.1} parent=1 // pred_check_branch
      %248 = sbr.rel (0) target = $region37
    $region36: #{nn_forward.1} parent=1 // pred_region
      %249 = dma.done [#allocation3], 128
    $region37: #{nn_forward.1} parent=1 // pred_fallthru
      _
    %250 = vsyncpa [#allocation3], 1

</llo_original>
